<compile_context>
chip_gen: v7x
topology: tpu7x:2x2x1
jax: 0.10.0
libtpu: 0.0.40
codegen_flags: <defaults>
</compile_context>

<pallas_src>
import jax
import jax.numpy as jnp
from jax.experimental import pallas as pl
from jax.experimental.pallas import tpu as pltpu


def _round_up(n, m):
    return ((n + m - 1) // m) * m


def poke_mlp_kernel(x_ref, w1_ref, w2_ref, vec_ref, o_ref):
    """Fused 3-layer MLP forward for one batch tile. All operands in VMEM."""
    x = x_ref[...]                       # (TN, D_in)
    b1 = vec_ref[0:1, :]                 # (1, H)  bias of layer 1
    b2 = vec_ref[1:2, :]                 # (1, H)  bias of layer 2 (BN1 folded in)
    wo = vec_ref[2:3, :]                 # (1, H)  output weight row (BN2 folded in)
    bo = vec_ref[3:4, 0:1]               # (1, 1)  output bias (BN2 folded in)

    # Layer 1: Linear -> ReLU           (BN1 already folded into layer-2 weights)
    h = jnp.dot(x, w1_ref[...], preferred_element_type=jnp.float32) + b1
    h = jnp.maximum(h, 0.0)

    # Layer 2: Linear -> ReLU           (BN2 already folded into the output head)
    h = jnp.dot(h, w2_ref[...], preferred_element_type=jnp.float32) + b2
    h = jnp.maximum(h, 0.0)

    # Dropout(0.1): identity in eval mode.

    # Output head Linear(H, 1): VPU mul + lane reduce (avoid a 1-column MXU pass).
    o_ref[...] = jnp.sum(h * wo, axis=-1, keepdims=True) + bo


def fold_params(params, eps=1e-5):
    """One-time preprocessing: fold both BatchNorms into the following Linears
    and pack the remaining per-feature vectors into a single (4, H) slab."""
    (w1, b1, g1, be1, rm1, rv1,
     w2, b2, g2, be2, rm2, rv2,
     wo, bo) = params

    s1 = g1 / jnp.sqrt(rv1 + eps)
    t1 = be1 - rm1 * s1
    s2 = g2 / jnp.sqrt(rv2 + eps)
    t2 = be2 - rm2 * s2

    # BN1 folded into Linear2:  (h*s1 + t1) @ w2 + b2 == h @ (s1[:,None]*w2) + (t1@w2 + b2)
    w2f = s1[:, None] * w2
    b2f = b2 + t1 @ w2

    # BN2 folded into output head: (h*s2 + t2) @ wo + bo == h @ (s2[:,None]*wo) + (t2@wo + bo)
    wof = s2 * wo[:, 0]                      # (H,)  output weight row
    bof = bo[0] + t2 @ wo[:, 0]              # scalar output bias

    H = w2.shape[0]
    vec = jnp.stack(
        [b1, b2f, wof, jnp.full((H,), bof, jnp.float32)], axis=0)   # (4, H)
    return w1.astype(jnp.float32), w2f.astype(jnp.float32), vec.astype(jnp.float32)


def poke_predictor_forward(x, folded):
    """Fused Pallas forward. `folded` is the output of fold_params (precomputed once)."""
    w1, w2f, vec = folded
    N, D_in = x.shape
    H = w1.shape[1]

    # Row tile: big enough to pipeline real batches, small enough that the
    # (TN, H) activations comfortably fit VMEM on all generations (incl. v7x's 64 MiB).
    TN = min(1024, _round_up(N, 8))
    grid = (pl.cdiv(N, TN),)

    return pl.pallas_call(
        poke_mlp_kernel,
        out_shape=jax.ShapeDtypeStruct((N, 1), jnp.float32),
        grid=grid,
        in_specs=[
            pl.BlockSpec((TN, D_in), lambda i: (i, 0)),   # batch-tiled activations
            pl.BlockSpec((D_in, H), lambda i: (0, 0)),    # layer-1 weights (resident)
            pl.BlockSpec((H, H), lambda i: (0, 0)),       # folded layer-2 weights (resident)
            pl.BlockSpec((4, H), lambda i: (0, 0)),       # packed bias/head slab
        ],
        # (TN, 1) output is fine while the head is 1-wide and TN modest; a
        # lane-dense (1, TN) layout only pays off at very large batch counts.
        out_specs=pl.BlockSpec((TN, 1), lambda i: (i, 0)),
        compiler_params=pltpu.CompilerParams(
            dimension_semantics=("parallel",)),           # shards over 2 TCs on v7x
    )(x, w1, w2f, vec)


def init_params(key, input_size, hidden_size):
    """Deterministic synthetic parameters matching the PyTorch module's shapes."""
    ks = jax.random.split(key, 10)

    def lin_init(kw, kb, fan_in, fan_out):
        bound = 1.0 / jnp.sqrt(fan_in)
        w = jax.random.uniform(kw, (fan_in, fan_out), jnp.float32, -bound, bound)
        b = jax.random.uniform(kb, (fan_out,), jnp.float32, -bound, bound)
        return w, b

    w1, b1 = lin_init(ks[0], ks[1], input_size, hidden_size)
    w2, b2 = lin_init(ks[2], ks[3], hidden_size, hidden_size)
    wo, bo = lin_init(ks[4], ks[5], hidden_size, 1)

    # Nontrivial BatchNorm params / running stats (deterministic).
    g1 = 1.0 + 0.1 * jax.random.normal(ks[6], (hidden_size,), jnp.float32)
    be1 = 0.1 * jax.random.normal(ks[7], (hidden_size,), jnp.float32)
    rm1 = 0.05 * jax.random.normal(ks[8], (hidden_size,), jnp.float32)
    rv1 = 1.0 + 0.1 * jnp.abs(jax.random.normal(ks[9], (hidden_size,), jnp.float32))

    k2 = jax.random.split(jax.random.fold_in(key, 1), 4)
    g2 = 1.0 + 0.1 * jax.random.normal(k2[0], (hidden_size,), jnp.float32)
    be2 = 0.1 * jax.random.normal(k2[1], (hidden_size,), jnp.float32)
    rm2 = 0.05 * jax.random.normal(k2[2], (hidden_size,), jnp.float32)
    rv2 = 1.0 + 0.1 * jnp.abs(jax.random.normal(k2[3], (hidden_size,), jnp.float32))

    return (w1, b1, g1, be1, rm1, rv1,
            w2, b2, g2, be2, rm2, rv2,
            wo, bo)


def reference_forward(x, params):
    """Pure-JAX reference of the eval-mode PyTorch forward (unfolded BN math)."""
    (w1, b1, g1, be1, rm1, rv1,
     w2, b2, g2, be2, rm2, rv2,
     wo, bo) = params
    eps = 1e-5
    h = jnp.maximum(x @ w1 + b1, 0.0)
    h = (h - rm1) / jnp.sqrt(rv1 + eps) * g1 + be1
    h = jnp.maximum(h @ w2 + b2, 0.0)
    h = (h - rm2) / jnp.sqrt(rv2 + eps) * g2 + be2
    return h @ wo + bo


if __name__ == "__main__":
    INPUT_SIZE = 16   # number of pokemon features
    HIDDEN = 32
    BATCH = 8

    key = jax.random.PRNGKey(0)
    k_x, k_p = jax.random.split(key)

    x = jax.random.normal(k_x, (BATCH, INPUT_SIZE), jnp.float32)
    params = init_params(k_p, INPUT_SIZE, HIDDEN)

    # One-time parameter preprocessing (BN folds + vector packing) — NOT per call.
    folded = jax.tree_util.tree_map(jax.block_until_ready, fold_params(params))

    fwd = jax.jit(poke_predictor_forward)
    out = fwd(x, folded)
    out = jax.block_until_ready(out)

    ref = reference_forward(x, params)
    assert out.shape == (BATCH, 1)
    assert jnp.allclose(out, ref, atol=1e-4, rtol=1e-4), "Pallas output mismatch vs reference"

    print("KERNEL_OK")
</pallas_src>

<mosaic_0001>
module attributes {stable_mosaic.version = 11 : i64} {
  func.func @poke_mlp_kernel(%arg0: i32, %arg1: memref<8x16xf32, #tpu.memory_space<vmem>>, %arg2: memref<16x32xf32, #tpu.memory_space<vmem>>, %arg3: memref<32x32xf32, #tpu.memory_space<vmem>>, %arg4: memref<4x32xf32, #tpu.memory_space<vmem>>, %arg5: memref<8x1xf32, #tpu.memory_space<vmem>>) attributes {dimension_semantics = [#tpu.dimension_semantics<parallel>], iteration_bounds = array<i64: 1>, scalar_prefetch = 0 : i64, scratch_operands = 0 : i64, tpu.core_type = #tpu.core_type<tc>, window_params = [{transform_indices = @transform_0, window_bounds = array<i64: 8, 16>}, {pipeline_mode = #tpu.pipeline_mode<synchronous>, transform_indices = @transform_1, window_bounds = array<i64: 16, 32>}, {pipeline_mode = #tpu.pipeline_mode<synchronous>, transform_indices = @transform_2, window_bounds = array<i64: 32, 32>}, {pipeline_mode = #tpu.pipeline_mode<synchronous>, transform_indices = @transform_3, window_bounds = array<i64: 4, 32>}, {transform_indices = @transform_4, window_bounds = array<i64: 8, 1>}]} {
    %c0 = arith.constant 0 : index
    %c0_0 = arith.constant 0 : index
    %0 = vector.load %arg1[%c0, %c0_0] : memref<8x16xf32, #tpu.memory_space<vmem>>, vector<8x16xf32>
    %c0_1 = arith.constant 0 : index
    %c0_2 = arith.constant 0 : index
    %1 = vector.load %arg4[%c0_1, %c0_2] : memref<4x32xf32, #tpu.memory_space<vmem>>, vector<1x32xf32>
    %c1 = arith.constant 1 : index
    %c0_3 = arith.constant 0 : index
    %2 = vector.load %arg4[%c1, %c0_3] : memref<4x32xf32, #tpu.memory_space<vmem>>, vector<1x32xf32>
    %c2 = arith.constant 2 : index
    %c0_4 = arith.constant 0 : index
    %3 = vector.load %arg4[%c2, %c0_4] : memref<4x32xf32, #tpu.memory_space<vmem>>, vector<1x32xf32>
    %c3 = arith.constant 3 : index
    %c0_5 = arith.constant 0 : index
    %4 = vector.load %arg4[%c3, %c0_5] : memref<4x32xf32, #tpu.memory_space<vmem>>, vector<1x1xf32>
    %c0_6 = arith.constant 0 : index
    %c0_7 = arith.constant 0 : index
    %5 = vector.load %arg2[%c0_6, %c0_7] : memref<16x32xf32, #tpu.memory_space<vmem>>, vector<16x32xf32>
    %cst = arith.constant dense<0.000000e+00> : vector<8x32xf32>
    %6 = tpu.matmul %0, %5, %cst {dimension_numbers = #tpu.dot_dimension_numbers<[1], [0], [0], [1], [0, 0, 1, 1], [], []>} : vector<8x16xf32>, vector<16x32xf32>, vector<8x32xf32> -> vector<8x32xf32>
    %7 = vector.broadcast %1 : vector<1x32xf32> to vector<8x32xf32>
    %8 = arith.addf %6, %7 : vector<8x32xf32>
    %cst_8 = arith.constant 0.000000e+00 : f32
    %9 = vector.broadcast %cst_8 : f32 to vector<8x32xf32>
    %10 = arith.maximumf %8, %9 : vector<8x32xf32>
    %c0_9 = arith.constant 0 : index
    %c0_10 = arith.constant 0 : index
    %11 = vector.load %arg3[%c0_9, %c0_10] : memref<32x32xf32, #tpu.memory_space<vmem>>, vector<32x32xf32>
    %cst_11 = arith.constant dense<0.000000e+00> : vector<8x32xf32>
    %12 = tpu.matmul %10, %11, %cst_11 {dimension_numbers = #tpu.dot_dimension_numbers<[1], [0], [0], [1], [0, 0, 1, 1], [], []>} : vector<8x32xf32>, vector<32x32xf32>, vector<8x32xf32> -> vector<8x32xf32>
    %13 = vector.broadcast %2 : vector<1x32xf32> to vector<8x32xf32>
    %14 = arith.addf %12, %13 : vector<8x32xf32>
    %cst_12 = arith.constant 0.000000e+00 : f32
    %15 = vector.broadcast %cst_12 : f32 to vector<8x32xf32>
    %16 = arith.maximumf %14, %15 : vector<8x32xf32>
    %17 = vector.broadcast %3 : vector<1x32xf32> to vector<8x32xf32>
    %18 = arith.mulf %16, %17 : vector<8x32xf32>
    %cst_13 = arith.constant dense<0.000000e+00> : vector<8xf32>
    %19 = vector.multi_reduction <add>, %18, %cst_13 [1] : vector<8x32xf32> to vector<8xf32>
    %20 = vector.shape_cast %19 : vector<8xf32> to vector<8x1xf32>
    %21 = vector.broadcast %4 : vector<1x1xf32> to vector<8x1xf32>
    %22 = arith.addf %20, %21 : vector<8x1xf32>
    %c0_14 = arith.constant 0 : index
    %c0_15 = arith.constant 0 : index
    %23 = vector.load %arg5[%c0_14, %c0_15] : memref<8x1xf32, #tpu.memory_space<vmem>>, vector<8x1xf32>
    tpu.vector_store %arg5[%c0_14, %c0_15], %22 {strides = array<i32>} : memref<8x1xf32, #tpu.memory_space<vmem>>, vector<8x1xf32>,
    return
  }
  func.func @transform_0(%arg0: i32) -> (i32, i32) {
    %c0_i32 = arith.constant 0 : i32
    %c0_i32_0 = arith.constant 0 : i32
    return %arg0, %c0_i32 : i32, i32
  }
  func.func @transform_1(%arg0: i32) -> (i32, i32) {
    %c0_i32 = arith.constant 0 : i32
    %c0_i32_0 = arith.constant 0 : i32
    %c0_i32_1 = arith.constant 0 : i32
    return %c0_i32, %c0_i32_0 : i32, i32
  }
  func.func @transform_2(%arg0: i32) -> (i32, i32) {
    %c0_i32 = arith.constant 0 : i32
    %c0_i32_0 = arith.constant 0 : i32
    %c0_i32_1 = arith.constant 0 : i32
    return %c0_i32, %c0_i32_0 : i32, i32
  }
  func.func @transform_3(%arg0: i32) -> (i32, i32) {
    %c0_i32 = arith.constant 0 : i32
    %c0_i32_0 = arith.constant 0 : i32
    %c0_i32_1 = arith.constant 0 : i32
    return %c0_i32, %c0_i32_0 : i32, i32
  }
  func.func @transform_4(%arg0: i32) -> (i32, i32) {
    %c0_i32 = arith.constant 0 : i32
    %c0_i32_0 = arith.constant 0 : i32
    return %arg0, %c0_i32 : i32, i32
  }
}

</mosaic_0001>

<llo_original>
// kernel: poke_predictor_forward.1
$region0: #{poke_predictor_forward.1}
  #allocation0 [shape = 'u32[]', space=smem, size = 0x4, offset = 0x4, fixed_abs, tag = 'smem constant byte address 0x4 - core index']
  #allocation1 [shape = 'u32[144,128]{1,0:T(1,128)}', space=vmem, size = 0x12000, scoped, tag = 'internal scratch']
  %s0 = inlined_call_operand.hbm [shape: f32[8,16], index: 0, kind: input, shape index: {}]
  %s1 = inlined_call_operand.hbm [shape: f32[16,32], index: 1, kind: input, shape index: {}]
  %s2 = inlined_call_operand.hbm [shape: f32[32,32], index: 2, kind: input, shape index: {}]
  %s3 = inlined_call_operand.vmem [shape: f32[4,32], index: 3, kind: input, shape index: {}]
  %s4 = inlined_call_operand.vmem [shape: f32[8,1], index: 4, kind: output, shape index: {}]
  %s5 = sld [smem:[#allocation0]]
  $region38: #{poke_predictor_forward.1} parent=0
    _
  %s7 = ssub.s32 1, %s5
  %s8 = scalar_select 0, %s7, %s5
  $region1: #{poke_predictor_forward.1} parent=0
    #allocation2 [shape = 'u8[4096]{0}', space=vmem, size = 0x1000, scoped, tag = 'input window, operand 0, single buffered']
    #allocation3 [shape = 's32[1]{0}', space=sflag, size = 0x4, scoped, tag = 'scoped memory for poke_predictor_forward.1']
    #allocation4 [shape = 'u8[8192]{0}', space=vmem, size = 0x2000, scoped, tag = 'input window, operand 1, single buffered']
    #allocation5 [shape = 's32[1]{0}', space=sflag, size = 0x4, scoped, tag = 'scoped memory for poke_predictor_forward.1']
    #allocation6 [shape = 'u8[16384]{0}', space=vmem, size = 0x4000, scoped, tag = 'input window, operand 2, single buffered']
    %9 = vsyncpa [#allocation3], 0
    %10 = vsyncpa [#allocation5], 0
    // Predicated region
    $region2: #{poke_predictor_forward.1} parent=1 // pred_check
      _
    $region3: #{poke_predictor_forward.1} parent=1 // pred_check_branch
      %12 = sbr.rel (0) target = $region5
    $region4: #{poke_predictor_forward.1} parent=1 // pred_region
      %s14 = ssub.s32 128, 128
      %15 = vsyncadd [#allocation3], %s14
      %s17 = sshll.u32 [#allocation2], 4
      %s18 = int_to_ptr.vmem [resolvable:$true] %s17
      %20 = dma.hbm_to_vmem [thread:$0]  %s0, 128, %s18, [#allocation3]
    $region5: #{poke_predictor_forward.1} parent=1 // pred_fallthru
      _
    // Predicated region
    $region6: #{poke_predictor_forward.1} parent=1 // pred_check
      _
    $region7: #{poke_predictor_forward.1} parent=1 // pred_check_branch
      %22 = sbr.rel (0) target = $region9
    $region8: #{poke_predictor_forward.1} parent=1 // pred_region
      %s24 = ssub.s32 256, 256
      %25 = vsyncadd [#allocation5], %s24
      %s26 = sshll.u32 [#allocation4], 4
      %s27 = int_to_ptr.vmem [resolvable:$true] %s26
      %32 = dma.hbm_to_vmem [thread:$0]  %s1, 256, %s27, [#allocation5], 128, 128, 8
    $region9: #{poke_predictor_forward.1} parent=1 // pred_fallthru
      _
    // Predicated region
    $region10: #{poke_predictor_forward.1} parent=1 // pred_check
      _
    $region11: #{poke_predictor_forward.1} parent=1 // pred_check_branch
      %34 = sbr.rel (0) target = $region13
    $region12: #{poke_predictor_forward.1} parent=1 // pred_region
      %s36 = ssub.s32 512, 512
      %37 = vsyncadd [#allocation5], %s36
      %s38 = sshll.u32 [#allocation6], 4
      %s39 = int_to_ptr.vmem [resolvable:$true] %s38
      %44 = dma.hbm_to_vmem [thread:$0]  %s2, 512, %s39, [#allocation5], 128, 128, 8
    $region13: #{poke_predictor_forward.1} parent=1 // pred_fallthru
      _
    // Predicated region
    $region14: #{poke_predictor_forward.1} parent=1 // pred_check
      _
    $region15: #{poke_predictor_forward.1} parent=1 // pred_check_branch
      %46 = sbr.rel (0) target = $region17
    $region16: #{poke_predictor_forward.1} parent=1 // pred_region
      _
    $region17: #{poke_predictor_forward.1} parent=1 // pred_fallthru
      _
    // Predicated region
    $region18: #{poke_predictor_forward.1} parent=1 // pred_check
      _
    $region19: #{poke_predictor_forward.1} parent=1 // pred_check_branch
      %48 = sbr.rel (0) target = $region21
    $region20: #{poke_predictor_forward.1} parent=1 // pred_region
      %49 = dma.done [#allocation3], 128
    $region21: #{poke_predictor_forward.1} parent=1 // pred_fallthru
      _
    // Predicated region
    $region22: #{poke_predictor_forward.1} parent=1 // pred_check
      _
    $region23: #{poke_predictor_forward.1} parent=1 // pred_check_branch
      %51 = sbr.rel (0) target = $region25
    $region24: #{poke_predictor_forward.1} parent=1 // pred_region
      %52 = dma.done [#allocation5], 256
    $region25: #{poke_predictor_forward.1} parent=1 // pred_fallthru
      _
    // Predicated region
    $region26: #{poke_predictor_forward.1} parent=1 // pred_check
      _
    $region27: #{poke_predictor_forward.1} parent=1 // pred_check_branch
      %54 = sbr.rel (0) target = $region29
    $region28: #{poke_predictor_forward.1} parent=1 // pred_region
      %55 = dma.done [#allocation5], 512
    $region29: #{poke_predictor_forward.1} parent=1 // pred_fallthru
      _
    %v56 = vld [vmem:[#allocation2] sm:$0xff]
    %v57 = vld [vmem:[%s3] sm:$0x1]
    %v58 = vld [vmem:[%s3 + $0x1] sm:$0x1]
    %v59 = vld [vmem:[%s3 + $0x2] sm:$0x1]
    %v60 = vld [vmem:[%s3 + $0x3] sm:$0x1]
    %v61 = vld [vmem:[#allocation4] sm:$0xff]
    %v62 = vld [vmem:[#allocation4 + $0x8] sm:$0xff]
    %v63 = vlaneseq
    %v64 = vshrl.u32 %v63, 7
    %v65 = vsub.s32 0, %v64
    %v66 = vrot.slane %v57, %v65
    %vm67 = vcmask 130048
    %v69 = vsel %vm67, %v56, 0
    %71 = vmatprep.subr.mxu0 0.0
    %72 = vmatpush1.msra.mxu0 %v61
    %73 = vmatprep.subr.mxu0 0.0
    %74 = vmatpush1.msra.mxu0 %v62
    %75 = vmatprep.subr.mxu0 0.0
    %76 = vmatpush1.msra.mxu0 0.0
    %77 = vmatprep.subr.mxu0 0.0
    %78 = vmatpush1.msra.mxu0 0.0
    %79 = vmatprep.subr.mxu0 0.0
    %80 = vmatpush1.msra.mxu0 0.0
    %81 = vmatprep.subr.mxu0 0.0
    %82 = vmatpush1.msra.mxu0 0.0
    %83 = vmatprep.subr.mxu0 0.0
    %84 = vmatpush1.msra.mxu0 0.0
    %85 = vmatprep.subr.mxu0 0.0
    %86 = vmatpush1.msra.mxu0 0.0
    %87 = vmatprep.subr.mxu0 0.0
    %88 = vmatpush1.msra.mxu0 0.0
    %89 = vmatprep.subr.mxu0 0.0
    %90 = vmatpush1.msra.mxu0 0.0
    %91 = vmatprep.subr.mxu0 0.0
    %92 = vmatpush1.msra.mxu0 0.0
    %93 = vmatprep.subr.mxu0 0.0
    %94 = vmatpush1.msra.mxu0 0.0
    %95 = vmatprep.subr.mxu0 0.0
    %96 = vmatpush1.msra.mxu0 0.0
    %97 = vmatprep.subr.mxu0 0.0
    %98 = vmatpush1.msra.mxu0 0.0
    %99 = vmatprep.subr.mxu0 0.0
    %100 = vmatpush1.msra.mxu0 0.0
    %101 = vmatprep.subr.mxu0 0.0
    %102 = vmatpush1.msra.mxu0 0.0
    %103 = vmatprep.subr.mxu0 0.0
    %104 = vmatpush1.msra.mxu0 0.0
    %105 = vmatprep.subr.mxu0 0.0
    %106 = vmatpush1.msra.mxu0 0.0
    %107 = vmatprep.subr.mxu0 0.0
    %108 = vmatpush1.msra.mxu0 0.0
    %109 = vmatprep.subr.mxu0 0.0
    %110 = vmatpush1.msra.mxu0 0.0
    %111 = vmatprep.subr.mxu0 0.0
    %112 = vmatpush1.msra.mxu0 0.0
    %113 = vmatprep.subr.mxu0 0.0
    %114 = vmatpush1.msra.mxu0 0.0
    %115 = vmatprep.subr.mxu0 0.0
    %116 = vmatpush1.msra.mxu0 0.0
    %117 = vmatprep.subr.mxu0 0.0
    %118 = vmatpush1.msra.mxu0 0.0
    %119 = vmatprep.subr.mxu0 0.0
    %120 = vmatpush1.msra.mxu0 0.0
    %121 = vmatprep.subr.mxu0 0.0
    %122 = vmatpush1.msra.mxu0 0.0
    %123 = vmatprep.subr.mxu0 0.0
    %124 = vmatpush1.msra.mxu0 0.0
    %125 = vmatprep.subr.mxu0 0.0
    %126 = vmatpush1.msra.mxu0 0.0
    %127 = vmatprep.subr.mxu0 0.0
    %128 = vmatpush1.msra.mxu0 0.0
    %129 = vmatprep.subr.mxu0 0.0
    %130 = vmatpush1.msra.mxu0 0.0
    %131 = vmatprep.subr.mxu0 0.0
    %132 = vmatpush1.msra.mxu0 0.0
    %133 = vmatprep.subr.mxu0 0.0
    %134 = vmatpush1.msra.mxu0 0.0
    %135 = vmatprep.mubr.f32.mxu0 0.0
    %136 = vmatmul.mubr.f32.gmra.mrb[0].mxu0 %v69
    %v137 = vpop.f32.mrb[0].mxu0
    %v138 = vadd.f32 %v66, %v137
    %v139 = vpop.f32.mrb[0].mxu0
    %140 = vdwg.mxu0
    %v141 = vmax.f32 %v138, 0.0
    %v142 = vld [vmem:[#allocation6] sm:$0xff]
    %v143 = vld [vmem:[#allocation6 + $0x8] sm:$0xff]
    %v144 = vld [vmem:[#allocation6 + $0x10] sm:$0xff]
    %v145 = vld [vmem:[#allocation6 + $0x18] sm:$0xff]
    %v146 = vlaneseq
    %v147 = vshrl.u32 %v146, 7
    %v148 = vsub.s32 0, %v147
    %v149 = vrot.slane %v58, %v148
    %vm150 = vcmask 261120
    %v152 = vsel %vm150, %v141, 0
    %154 = vmatprep.subr.mxu0 0.0
    %155 = vmatpush1.msra.mxu0 %v142
    %156 = vmatprep.subr.mxu0 0.0
    %157 = vmatpush1.msra.mxu0 %v143
    %158 = vmatprep.subr.mxu0 0.0
    %159 = vmatpush1.msra.mxu0 %v144
    %160 = vmatprep.subr.mxu0 0.0
    %161 = vmatpush1.msra.mxu0 %v145
    %162 = vmatprep.subr.mxu0 0.0
    %163 = vmatpush1.msra.mxu0 0.0
    %164 = vmatprep.subr.mxu0 0.0
    %165 = vmatpush1.msra.mxu0 0.0
    %166 = vmatprep.subr.mxu0 0.0
    %167 = vmatpush1.msra.mxu0 0.0
    %168 = vmatprep.subr.mxu0 0.0
    %169 = vmatpush1.msra.mxu0 0.0
    %170 = vmatprep.subr.mxu0 0.0
    %171 = vmatpush1.msra.mxu0 0.0
    %172 = vmatprep.subr.mxu0 0.0
    %173 = vmatpush1.msra.mxu0 0.0
    %174 = vmatprep.subr.mxu0 0.0
    %175 = vmatpush1.msra.mxu0 0.0
    %176 = vmatprep.subr.mxu0 0.0
    %177 = vmatpush1.msra.mxu0 0.0
    %178 = vmatprep.subr.mxu0 0.0
    %179 = vmatpush1.msra.mxu0 0.0
    %180 = vmatprep.subr.mxu0 0.0
    %181 = vmatpush1.msra.mxu0 0.0
    %182 = vmatprep.subr.mxu0 0.0
    %183 = vmatpush1.msra.mxu0 0.0
    %184 = vmatprep.subr.mxu0 0.0
    %185 = vmatpush1.msra.mxu0 0.0
    %186 = vmatprep.subr.mxu0 0.0
    %187 = vmatpush1.msra.mxu0 0.0
    %188 = vmatprep.subr.mxu0 0.0
    %189 = vmatpush1.msra.mxu0 0.0
    %190 = vmatprep.subr.mxu0 0.0
    %191 = vmatpush1.msra.mxu0 0.0
    %192 = vmatprep.subr.mxu0 0.0
    %193 = vmatpush1.msra.mxu0 0.0
    %194 = vmatprep.subr.mxu0 0.0
    %195 = vmatpush1.msra.mxu0 0.0
    %196 = vmatprep.subr.mxu0 0.0
    %197 = vmatpush1.msra.mxu0 0.0
    %198 = vmatprep.subr.mxu0 0.0
    %199 = vmatpush1.msra.mxu0 0.0
    %200 = vmatprep.subr.mxu0 0.0
    %201 = vmatpush1.msra.mxu0 0.0
    %202 = vmatprep.subr.mxu0 0.0
    %203 = vmatpush1.msra.mxu0 0.0
    %204 = vmatprep.subr.mxu0 0.0
    %205 = vmatpush1.msra.mxu0 0.0
    %206 = vmatprep.subr.mxu0 0.0
    %207 = vmatpush1.msra.mxu0 0.0
    %208 = vmatprep.subr.mxu0 0.0
    %209 = vmatpush1.msra.mxu0 0.0
    %210 = vmatprep.subr.mxu0 0.0
    %211 = vmatpush1.msra.mxu0 0.0
    %212 = vmatprep.subr.mxu0 0.0
    %213 = vmatpush1.msra.mxu0 0.0
    %214 = vmatprep.subr.mxu0 0.0
    %215 = vmatpush1.msra.mxu0 0.0
    %216 = vmatprep.subr.mxu0 0.0
    %217 = vmatpush1.msra.mxu0 0.0
    %218 = vmatprep.mubr.f32.mxu0 0.0
    %219 = vmatmul.mubr.f32.gmra.mrb[0].mxu0 %v152
    %v220 = vpop.f32.mrb[0].mxu0
    %v221 = vadd.f32 %v149, %v220
    %v222 = vpop.f32.mrb[0].mxu0
    %223 = vdwg.mxu0
    %v224 = vmax.f32 %v221, 0.0
    %v225 = vlaneseq
    %v226 = vshrl.u32 %v225, 7
    %v227 = vsub.s32 0, %v226
    %v228 = vrot.slane %v59, %v227
    %v229 = vmul.f32 %v224, %v228
    %v230 = vsel %vm150, %v229, 0.0
    %231 = vadd.xlane.f32.xlu0 %v230
    %v232 = vpop.xlane.xlu0 %231
    %v233 = vlaneseq
    %v234 = vshrl.u32 %v233, 7
    %v235 = vsub.s32 0, %v234
    %v236 = vrot.slane %v60, %v235
    %v237 = vadd.f32 %v232, %v236
    %vm238 = vcmask 7168
    %239 = vst.msk [vmem:[%s4] sm:$0xff] %vm238, %v237
    // Predicated region
    $region30: #{poke_predictor_forward.1} parent=1 // pred_check
      _
    $region31: #{poke_predictor_forward.1} parent=1 // pred_check_branch
      %241 = sbr.rel (0) target = $region33
    $region32: #{poke_predictor_forward.1} parent=1 // pred_region
      _
    $region33: #{poke_predictor_forward.1} parent=1 // pred_fallthru
      _
    // Predicated region
    $region34: #{poke_predictor_forward.1} parent=1 // pred_check
      _
    $region35: #{poke_predictor_forward.1} parent=1 // pred_check_branch
      %243 = sbr.rel (0) target = $region37
    $region36: #{poke_predictor_forward.1} parent=1 // pred_region
      _
    $region37: #{poke_predictor_forward.1} parent=1 // pred_fallthru
      _
    %244 = vsyncpa [#allocation3], 1
    %245 = vsyncpa [#allocation5], 1

</llo_original>
